<compile_context>
chip_gen: v5e
topology: v5e:2x2
jax: 0.10.0
libtpu: 0.0.40
codegen_flags: <defaults>
</compile_context>

<pallas_src>
import functools

import jax
import jax.numpy as jnp
from jax.experimental import pallas as pl
from jax.experimental.pallas import tpu as pltpu

EPS = 1e-12


# ----------------------------------------------------------------------------
# Kernel 1: spectral norm (1 power iteration) -> u_new, sigma, 1/sigma
# ----------------------------------------------------------------------------
def _spectral_norm_kernel(w_ref, v_ref, u_ref, sig_ref, inv_sig_ref):
    # w_ref: (C_out, K) VMEM, v_ref: (K, 1) VMEM
    w = w_ref[...]
    v = v_ref[...]
    # NOTE: the reference also computes wt_u = W^T u and a local v_data, but neither
    # affects any output (v is never written back), so they are omitted.
    w_v = jnp.dot(w, v, preferred_element_type=jnp.float32)      # (C_out, 1)
    norm = jnp.sqrt(jnp.sum(w_v * w_v))
    u_new = w_v / (norm + EPS)                                    # l2normalize(W v)
    sigma = jnp.sum(u_new * w_v)                                  # dot(u_new, W v)
    u_ref[...] = u_new
    sig_ref[0] = sigma                                            # SMEM scalar outputs
    inv_sig_ref[0] = 1.0 / sigma


def spectral_normalize(w_mat, v):
    """One power-iteration step. Returns (u_new (C_out,), sigma (), inv_sigma (1,))."""
    C_out, K = w_mat.shape
    v2 = v.reshape(K, 1).astype(jnp.float32)
    u_new, sigma, inv_sigma = pl.pallas_call(
        _spectral_norm_kernel,
        out_shape=(
            jax.ShapeDtypeStruct((C_out, 1), jnp.float32),
            jax.ShapeDtypeStruct((1,), jnp.float32),
            jax.ShapeDtypeStruct((1,), jnp.float32),
        ),
        in_specs=[
            pl.BlockSpec(memory_space=pltpu.MemorySpace.VMEM),
            pl.BlockSpec(memory_space=pltpu.MemorySpace.VMEM),
        ],
        out_specs=(
            pl.BlockSpec(memory_space=pltpu.MemorySpace.VMEM),
            pl.BlockSpec(memory_space=pltpu.MemorySpace.SMEM),
            pl.BlockSpec(memory_space=pltpu.MemorySpace.SMEM),
        ),
    )(w_mat.astype(jnp.float32), v2)
    return u_new.reshape(C_out), sigma.reshape(()), inv_sigma


# ----------------------------------------------------------------------------
# Kernel 2: fused conv2d(x, w_bar / sigma, bias) via 9 lane-shifted tap matmuls
# ----------------------------------------------------------------------------
def _conv_taps_kernel(inv_sig_ref, x_ref, w_ref, b_ref, o_ref, *,
                      C_out, KH, KW, WP, HPWP, PADM):
    # inv_sig_ref: (1,)                  SMEM (1/sigma)
    # x_ref      : (1, C_in, L)          VMEM, L = HPWP + 2*PADM (flat padded image + margins)
    # w_ref      : (KH*KW, C_out, C_in)  VMEM, resident (constant index map)
    # b_ref      : (C_out, 1)            VMEM, resident
    # o_ref      : (1, C_out, HPWP)      VMEM, conv over the *padded* grid; cropped in JAX
    x = x_ref[0]                                            # (C_in, L), loaded once
    acc = jnp.zeros((C_out, HPWP), dtype=jnp.float32)
    for t in range(KH * KW):                                # 9 static taps
        kh, kw = divmod(t, KW)
        off = (kh - 1) * WP + (kw - 1)                      # static flat shift in [-(WP+1), WP+1]
        start = PADM + off
        xs = x[:, start:start + HPWP]                       # (C_in, HPWP) static lane slice
        acc = acc + jnp.dot(w_ref[t], xs, preferred_element_type=jnp.float32)
    # epilogue: fold 1/sigma (spectral norm) and bias, keep f32 on the VPU.
    o_ref[0] = acc * inv_sig_ref[0] + b_ref[...]


def conv2d_spectral(x, w_bar, bias, inv_sigma):
    """conv2d(x, w_bar / sigma, bias, stride=1, padding=1) without materializing w/sigma."""
    N, C_in, H, W = x.shape
    C_out, _, KH, KW = w_bar.shape
    assert (KH, KW) == (3, 3), "this kernel is specialized for 3x3, stride=1, padding=1"
    HP, WP = H + 2, W + 2                 # conv's own padding=1 grid
    HPWP = HP * WP
    PADM = WP + 1                         # flat margin so every tap slice stays in range
    L = HPWP + 2 * PADM

    # Glue (cheap, no 9x im2col expansion): spatial pad -> flatten -> small flat margin.
    x_pad = jnp.pad(x.astype(jnp.float32), ((0, 0), (0, 0), (1, 1), (1, 1)))
    x_lin = jnp.pad(x_pad.reshape(N, C_in, HPWP), ((0, 0), (0, 0), (PADM, PADM)))
    # w_taps[t, co, ci] = w_bar[co, ci, kh, kw], t = kh*KW + kw   (tiny reorder, ~1 KiB)
    w_taps = jnp.transpose(w_bar.astype(jnp.float32), (2, 3, 0, 1)).reshape(KH * KW, C_out, C_in)
    b2 = bias.astype(jnp.float32).reshape(C_out, 1)

    kernel = functools.partial(_conv_taps_kernel, C_out=C_out, KH=KH, KW=KW,
                               WP=WP, HPWP=HPWP, PADM=PADM)

    flops = 2 * N * HPWP * C_in * KH * KW * C_out
    bytes_accessed = 4 * (N * C_in * L + KH * KW * C_out * C_in + C_out + N * C_out * HPWP)

    z = pl.pallas_call(
        kernel,
        out_shape=jax.ShapeDtypeStruct((N, C_out, HPWP), jnp.float32),
        grid=(N,),
        in_specs=[
            pl.BlockSpec(memory_space=pltpu.MemorySpace.SMEM),            # 1/sigma scalar
            pl.BlockSpec((1, C_in, L), lambda n: (n, 0, 0)),              # per-image slab
            pl.BlockSpec((KH * KW, C_out, C_in), lambda n: (0, 0, 0)),    # resident taps
            pl.BlockSpec((C_out, 1), lambda n: (0, 0)),                   # resident bias
        ],
        out_specs=pl.BlockSpec((1, C_out, HPWP), lambda n: (n, 0, 0)),    # lane-dense (324)
        compiler_params=pltpu.CompilerParams(dimension_semantics=("parallel",)),
        cost_estimate=pl.CostEstimate(flops=flops, transcendentals=0,
                                      bytes_accessed=bytes_accessed),
    )(inv_sigma, x_lin, w_taps, b2)

    # Output is already channel-major (NCHW-ordered); only a spatial crop remains.
    y = z.reshape(N, C_out, HP, WP)[:, :, 1:1 + H, 1:1 + W]
    return y


# ----------------------------------------------------------------------------
# SpectralNorm(Conv2d) forward
# ----------------------------------------------------------------------------
def spectral_norm_conv_forward(x, w_bar, bias, u, v):
    """Forward of SpectralNorm(Conv2d(C_in, C_out, 3, stride=1, padding=1)).

    Returns (y, u_new, sigma).  `u` is accepted for interface parity with the PyTorch
    module, but (as in the reference with power_iterations=1) it does not influence
    any output, so it is unused.
    """
    del u
    C_out, C_in, KH, KW = w_bar.shape
    w_mat = w_bar.reshape(C_out, C_in * KH * KW)
    u_new, sigma, inv_sigma = spectral_normalize(w_mat, v)
    y = conv2d_spectral(x, w_bar, bias, inv_sigma)
    return y, u_new, sigma


def l2normalize(v, eps=EPS):
    return v / (jnp.linalg.norm(v) + eps)


if __name__ == "__main__":
    key = jax.random.PRNGKey(0)
    k_w, k_b, k_u, k_v, k_x = jax.random.split(key, 5)

    # Inner module: Conv2d(in_channels=4, out_channels=8, kernel_size=3, stride=1, padding=1)
    N, C_in, H, W = 2, 4, 16, 16
    C_out, KH, KW = 8, 3, 3
    height = C_out
    width = C_in * KH * KW

    w_bar = jax.random.normal(k_w, (C_out, C_in, KH, KW), dtype=jnp.float32) * 0.1
    bias = jax.random.normal(k_b, (C_out,), dtype=jnp.float32) * 0.1
    u = l2normalize(jax.random.normal(k_u, (height,), dtype=jnp.float32))
    v = l2normalize(jax.random.normal(k_v, (width,), dtype=jnp.float32))
    x = jax.random.normal(k_x, (N, C_in, H, W), dtype=jnp.float32)

    fwd = jax.jit(spectral_norm_conv_forward)
    y, u_new, sigma = fwd(x, w_bar, bias, u, v)
    jax.block_until_ready((y, u_new, sigma))

    # Sanity check against a pure-JAX reference of the same semantics.
    w_mat = w_bar.reshape(height, width)
    w_v_ref = w_mat @ v
    u_ref = w_v_ref / (jnp.linalg.norm(w_v_ref) + EPS)
    sigma_ref = jnp.dot(u_ref, w_v_ref)
    w_ref = w_bar / sigma_ref
    y_ref = jax.lax.conv_general_dilated(
        x, w_ref, window_strides=(1, 1), padding=((1, 1), (1, 1)),
        dimension_numbers=("NCHW", "OIHW", "NCHW"),
    ) + bias.reshape(1, C_out, 1, 1)

    assert jnp.allclose(sigma, sigma_ref, rtol=1e-5, atol=1e-5)
    assert jnp.allclose(u_new, u_ref, rtol=1e-5, atol=1e-5)
    assert jnp.allclose(y, y_ref, rtol=1e-4, atol=1e-4), float(jnp.max(jnp.abs(y - y_ref)))

    print("KERNEL_OK")
</pallas_src>

<mosaic_0001>
module attributes {stable_mosaic.version = 11 : i64} {
  func.func @_spectral_norm_kernel(%arg0: memref<8x36xf32, #tpu.memory_space<vmem>>, %arg1: memref<36x1xf32, #tpu.memory_space<vmem>>, %arg2: memref<8x1xf32, #tpu.memory_space<vmem>>, %arg3: memref<1xf32, #tpu.memory_space<smem>>, %arg4: memref<1xf32, #tpu.memory_space<smem>>) attributes {dimension_semantics = [], scalar_prefetch = 0 : i64, scratch_operands = 0 : i64, tpu.core_type = #tpu.core_type<tc>} {
    %c0 = arith.constant 0 : index
    %c0_0 = arith.constant 0 : index
    %0 = vector.load %arg0[%c0, %c0_0] : memref<8x36xf32, #tpu.memory_space<vmem>>, vector<8x36xf32>
    %c0_1 = arith.constant 0 : index
    %c0_2 = arith.constant 0 : index
    %1 = vector.load %arg1[%c0_1, %c0_2] : memref<36x1xf32, #tpu.memory_space<vmem>>, vector<36x1xf32>
    %cst = arith.constant dense<0.000000e+00> : vector<8x1xf32>
    %2 = tpu.matmul %0, %1, %cst {dimension_numbers = #tpu.dot_dimension_numbers<[1], [0], [0], [1], [0, 0, 1, 1], [], []>} : vector<8x36xf32>, vector<36x1xf32>, vector<8x1xf32> -> vector<8x1xf32>
    %3 = arith.mulf %2, %2 : vector<8x1xf32>
    %4 = vector.shape_cast %3 : vector<8x1xf32> to vector<1x8x1xf32>
    %cst_3 = arith.constant dense<0.000000e+00> : vector<1xf32>
    %5 = vector.multi_reduction <add>, %4, %cst_3 [1, 2] : vector<1x8x1xf32> to vector<1xf32>
    %6 = vector.shape_cast %5 : vector<1xf32> to vector<1x1x1xf32>
    %7 = vector.extract %6[0, 0, 0] : f32 from vector<1x1x1xf32>
    %8 = math.sqrt %7 : f32
    %cst_4 = arith.constant 9.99999996E-13 : f32
    %9 = arith.addf %8, %cst_4 : f32
    %10 = vector.broadcast %9 : f32 to vector<8x1xf32>
    %11 = arith.divf %2, %10 : vector<8x1xf32>
    %12 = arith.mulf %11, %2 : vector<8x1xf32>
    %13 = vector.shape_cast %12 : vector<8x1xf32> to vector<1x8x1xf32>
    %cst_5 = arith.constant dense<0.000000e+00> : vector<1xf32>
    %14 = vector.multi_reduction <add>, %13, %cst_5 [1, 2] : vector<1x8x1xf32> to vector<1xf32>
    %15 = vector.shape_cast %14 : vector<1xf32> to vector<1x1x1xf32>
    %16 = vector.extract %15[0, 0, 0] : f32 from vector<1x1x1xf32>
    %c0_6 = arith.constant 0 : index
    %c0_7 = arith.constant 0 : index
    %17 = vector.load %arg2[%c0_6, %c0_7] : memref<8x1xf32, #tpu.memory_space<vmem>>, vector<8x1xf32>
    tpu.vector_store %arg2[%c0_6, %c0_7], %11 {strides = array<i32>} : memref<8x1xf32, #tpu.memory_space<vmem>>, vector<8x1xf32>,
    %c0_8 = arith.constant 0 : index
    %18 = memref.load %arg3[%c0_8] : memref<1xf32, #tpu.memory_space<smem>>
    memref.store %16, %arg3[%c0_8] : memref<1xf32, #tpu.memory_space<smem>>
    %cst_9 = arith.constant 1.000000e+00 : f32
    %19 = arith.divf %cst_9, %16 : f32
    %c0_10 = arith.constant 0 : index
    %20 = memref.load %arg4[%c0_10] : memref<1xf32, #tpu.memory_space<smem>>
    memref.store %19, %arg4[%c0_10] : memref<1xf32, #tpu.memory_space<smem>>
    return
  }
}

module attributes {stable_mosaic.version = 11 : i64} {
  func.func @_conv_taps_kernel(%arg0: i32, %arg1: memref<1xf32, #tpu.memory_space<smem>>, %arg2: memref<1x4x362xf32, #tpu.memory_space<vmem>>, %arg3: memref<9x8x4xf32, #tpu.memory_space<vmem>>, %arg4: memref<8x1xf32, #tpu.memory_space<vmem>>, %arg5: memref<1x8x324xf32, #tpu.memory_space<vmem>>) attributes {dimension_semantics = [#tpu.dimension_semantics<parallel>], iteration_bounds = array<i64: 2>, scalar_prefetch = 0 : i64, scratch_operands = 0 : i64, tpu.core_type = #tpu.core_type<tc>, window_params = [{transform_indices = @transform_0, window_bounds = array<i64: 1>}, {transform_indices = @transform_1, window_bounds = array<i64: 1, 4, 362>}, {pipeline_mode = #tpu.pipeline_mode<synchronous>, transform_indices = @transform_2, window_bounds = array<i64: 9, 8, 4>}, {pipeline_mode = #tpu.pipeline_mode<synchronous>, transform_indices = @transform_3, window_bounds = array<i64: 8, 1>}, {transform_indices = @transform_4, window_bounds = array<i64: 1, 8, 324>}]} {
    %c0 = arith.constant 0 : index
    %c0_0 = arith.constant 0 : index
    %c0_1 = arith.constant 0 : index
    %0 = vector.load %arg2[%c0, %c0_0, %c0_1] : memref<1x4x362xf32, #tpu.memory_space<vmem>>, vector<1x4x362xf32>
    %1 = vector.shape_cast %0 : vector<1x4x362xf32> to vector<4x362xf32>
    %cst = arith.constant 0.000000e+00 : f32
    %2 = vector.broadcast %cst : f32 to vector<8x324xf32>
    %3 = vector.extract_strided_slice %1 {offsets = [0, 0], sizes = [4, 324], strides = [1, 1]} : vector<4x362xf32> to vector<4x324xf32>
    %c0_2 = arith.constant 0 : index
    %c0_3 = arith.constant 0 : index
    %c0_4 = arith.constant 0 : index
    %4 = vector.load %arg3[%c0_2, %c0_3, %c0_4] : memref<9x8x4xf32, #tpu.memory_space<vmem>>, vector<1x8x4xf32>
    %5 = vector.shape_cast %4 : vector<1x8x4xf32> to vector<8x4xf32>
    %cst_5 = arith.constant dense<0.000000e+00> : vector<8x324xf32>
    %6 = tpu.matmul %5, %3, %cst_5 {dimension_numbers = #tpu.dot_dimension_numbers<[1], [0], [0], [1], [0, 0, 1, 1], [], []>} : vector<8x4xf32>, vector<4x324xf32>, vector<8x324xf32> -> vector<8x324xf32>
    %7 = arith.addf %2, %6 : vector<8x324xf32>
    %8 = vector.extract_strided_slice %1 {offsets = [0, 1], sizes = [4, 324], strides = [1, 1]} : vector<4x362xf32> to vector<4x324xf32>
    %c1 = arith.constant 1 : index
    %c0_6 = arith.constant 0 : index
    %c0_7 = arith.constant 0 : index
    %9 = vector.load %arg3[%c1, %c0_6, %c0_7] : memref<9x8x4xf32, #tpu.memory_space<vmem>>, vector<1x8x4xf32>
    %10 = vector.shape_cast %9 : vector<1x8x4xf32> to vector<8x4xf32>
    %cst_8 = arith.constant dense<0.000000e+00> : vector<8x324xf32>
    %11 = tpu.matmul %10, %8, %cst_8 {dimension_numbers = #tpu.dot_dimension_numbers<[1], [0], [0], [1], [0, 0, 1, 1], [], []>} : vector<8x4xf32>, vector<4x324xf32>, vector<8x324xf32> -> vector<8x324xf32>
    %12 = arith.addf %7, %11 : vector<8x324xf32>
    %13 = vector.extract_strided_slice %1 {offsets = [0, 2], sizes = [4, 324], strides = [1, 1]} : vector<4x362xf32> to vector<4x324xf32>
    %c2 = arith.constant 2 : index
    %c0_9 = arith.constant 0 : index
    %c0_10 = arith.constant 0 : index
    %14 = vector.load %arg3[%c2, %c0_9, %c0_10] : memref<9x8x4xf32, #tpu.memory_space<vmem>>, vector<1x8x4xf32>
    %15 = vector.shape_cast %14 : vector<1x8x4xf32> to vector<8x4xf32>
    %cst_11 = arith.constant dense<0.000000e+00> : vector<8x324xf32>
    %16 = tpu.matmul %15, %13, %cst_11 {dimension_numbers = #tpu.dot_dimension_numbers<[1], [0], [0], [1], [0, 0, 1, 1], [], []>} : vector<8x4xf32>, vector<4x324xf32>, vector<8x324xf32> -> vector<8x324xf32>
    %17 = arith.addf %12, %16 : vector<8x324xf32>
    %18 = vector.extract_strided_slice %1 {offsets = [0, 18], sizes = [4, 324], strides = [1, 1]} : vector<4x362xf32> to vector<4x324xf32>
    %c3 = arith.constant 3 : index
    %c0_12 = arith.constant 0 : index
    %c0_13 = arith.constant 0 : index
    %19 = vector.load %arg3[%c3, %c0_12, %c0_13] : memref<9x8x4xf32, #tpu.memory_space<vmem>>, vector<1x8x4xf32>
    %20 = vector.shape_cast %19 : vector<1x8x4xf32> to vector<8x4xf32>
    %cst_14 = arith.constant dense<0.000000e+00> : vector<8x324xf32>
    %21 = tpu.matmul %20, %18, %cst_14 {dimension_numbers = #tpu.dot_dimension_numbers<[1], [0], [0], [1], [0, 0, 1, 1], [], []>} : vector<8x4xf32>, vector<4x324xf32>, vector<8x324xf32> -> vector<8x324xf32>
    %22 = arith.addf %17, %21 : vector<8x324xf32>
    %23 = vector.extract_strided_slice %1 {offsets = [0, 19], sizes = [4, 324], strides = [1, 1]} : vector<4x362xf32> to vector<4x324xf32>
    %c4 = arith.constant 4 : index
    %c0_15 = arith.constant 0 : index
    %c0_16 = arith.constant 0 : index
    %24 = vector.load %arg3[%c4, %c0_15, %c0_16] : memref<9x8x4xf32, #tpu.memory_space<vmem>>, vector<1x8x4xf32>
    %25 = vector.shape_cast %24 : vector<1x8x4xf32> to vector<8x4xf32>
    %cst_17 = arith.constant dense<0.000000e+00> : vector<8x324xf32>
    %26 = tpu.matmul %25, %23, %cst_17 {dimension_numbers = #tpu.dot_dimension_numbers<[1], [0], [0], [1], [0, 0, 1, 1], [], []>} : vector<8x4xf32>, vector<4x324xf32>, vector<8x324xf32> -> vector<8x324xf32>
    %27 = arith.addf %22, %26 : vector<8x324xf32>
    %28 = vector.extract_strided_slice %1 {offsets = [0, 20], sizes = [4, 324], strides = [1, 1]} : vector<4x362xf32> to vector<4x324xf32>
    %c5 = arith.constant 5 : index
    %c0_18 = arith.constant 0 : index
    %c0_19 = arith.constant 0 : index
    %29 = vector.load %arg3[%c5, %c0_18, %c0_19] : memref<9x8x4xf32, #tpu.memory_space<vmem>>, vector<1x8x4xf32>
    %30 = vector.shape_cast %29 : vector<1x8x4xf32> to vector<8x4xf32>
    %cst_20 = arith.constant dense<0.000000e+00> : vector<8x324xf32>
    %31 = tpu.matmul %30, %28, %cst_20 {dimension_numbers = #tpu.dot_dimension_numbers<[1], [0], [0], [1], [0, 0, 1, 1], [], []>} : vector<8x4xf32>, vector<4x324xf32>, vector<8x324xf32> -> vector<8x324xf32>
    %32 = arith.addf %27, %31 : vector<8x324xf32>
    %33 = vector.extract_strided_slice %1 {offsets = [0, 36], sizes = [4, 324], strides = [1, 1]} : vector<4x362xf32> to vector<4x324xf32>
    %c6 = arith.constant 6 : index
    %c0_21 = arith.constant 0 : index
    %c0_22 = arith.constant 0 : index
    %34 = vector.load %arg3[%c6, %c0_21, %c0_22] : memref<9x8x4xf32, #tpu.memory_space<vmem>>, vector<1x8x4xf32>
    %35 = vector.shape_cast %34 : vector<1x8x4xf32> to vector<8x4xf32>
    %cst_23 = arith.constant dense<0.000000e+00> : vector<8x324xf32>
    %36 = tpu.matmul %35, %33, %cst_23 {dimension_numbers = #tpu.dot_dimension_numbers<[1], [0], [0], [1], [0, 0, 1, 1], [], []>} : vector<8x4xf32>, vector<4x324xf32>, vector<8x324xf32> -> vector<8x324xf32>
    %37 = arith.addf %32, %36 : vector<8x324xf32>
    %38 = vector.extract_strided_slice %1 {offsets = [0, 37], sizes = [4, 324], strides = [1, 1]} : vector<4x362xf32> to vector<4x324xf32>
    %c7 = arith.constant 7 : index
    %c0_24 = arith.constant 0 : index
    %c0_25 = arith.constant 0 : index
    %39 = vector.load %arg3[%c7, %c0_24, %c0_25] : memref<9x8x4xf32, #tpu.memory_space<vmem>>, vector<1x8x4xf32>
    %40 = vector.shape_cast %39 : vector<1x8x4xf32> to vector<8x4xf32>
    %cst_26 = arith.constant dense<0.000000e+00> : vector<8x324xf32>
    %41 = tpu.matmul %40, %38, %cst_26 {dimension_numbers = #tpu.dot_dimension_numbers<[1], [0], [0], [1], [0, 0, 1, 1], [], []>} : vector<8x4xf32>, vector<4x324xf32>, vector<8x324xf32> -> vector<8x324xf32>
    %42 = arith.addf %37, %41 : vector<8x324xf32>
    %43 = vector.extract_strided_slice %1 {offsets = [0, 38], sizes = [4, 324], strides = [1, 1]} : vector<4x362xf32> to vector<4x324xf32>
    %c8 = arith.constant 8 : index
    %c0_27 = arith.constant 0 : index
    %c0_28 = arith.constant 0 : index
    %44 = vector.load %arg3[%c8, %c0_27, %c0_28] : memref<9x8x4xf32, #tpu.memory_space<vmem>>, vector<1x8x4xf32>
    %45 = vector.shape_cast %44 : vector<1x8x4xf32> to vector<8x4xf32>
    %cst_29 = arith.constant dense<0.000000e+00> : vector<8x324xf32>
    %46 = tpu.matmul %45, %43, %cst_29 {dimension_numbers = #tpu.dot_dimension_numbers<[1], [0], [0], [1], [0, 0, 1, 1], [], []>} : vector<8x4xf32>, vector<4x324xf32>, vector<8x324xf32> -> vector<8x324xf32>
    %47 = arith.addf %42, %46 : vector<8x324xf32>
    %c0_30 = arith.constant 0 : index
    %48 = memref.load %arg1[%c0_30] : memref<1xf32, #tpu.memory_space<smem>>
    %49 = vector.broadcast %48 : f32 to vector<8x324xf32>
    %50 = arith.mulf %47, %49 : vector<8x324xf32>
    %c0_31 = arith.constant 0 : index
    %c0_32 = arith.constant 0 : index
    %51 = vector.load %arg4[%c0_31, %c0_32] : memref<8x1xf32, #tpu.memory_space<vmem>>, vector<8x1xf32>
    %52 = vector.broadcast %51 : vector<8x1xf32> to vector<8x324xf32>
    %53 = arith.addf %50, %52 : vector<8x324xf32>
    %c0_33 = arith.constant 0 : index
    %c0_34 = arith.constant 0 : index
    %c0_35 = arith.constant 0 : index
    %54 = vector.load %arg5[%c0_33, %c0_34, %c0_35] : memref<1x8x324xf32, #tpu.memory_space<vmem>>, vector<1x8x324xf32>
    %55 = vector.shape_cast %54 : vector<1x8x324xf32> to vector<8x324xf32>
    %56 = vector.shape_cast %53 : vector<8x324xf32> to vector<1x8x324xf32>
    tpu.vector_store %arg5[%c0_33, %c0_34, %c0_35], %56 {strides = array<i32>} : memref<1x8x324xf32, #tpu.memory_space<vmem>>, vector<1x8x324xf32>,
    return
  }
  func.func @transform_0(%arg0: i32) -> i32 {
    %c0_i32 = arith.constant 0 : i32
    %c0_i32_0 = arith.constant 0 : i32
    return %c0_i32 : i32
  }
  func.func @transform_1(%arg0: i32) -> (i32, i32, i32) {
    %c0_i32 = arith.constant 0 : i32
    %c0_i32_0 = arith.constant 0 : i32
    %c0_i32_1 = arith.constant 0 : i32
    return %arg0, %c0_i32, %c0_i32_0 : i32, i32, i32
  }
  func.func @transform_2(%arg0: i32) -> (i32, i32, i32) {
    %c0_i32 = arith.constant 0 : i32
    %c0_i32_0 = arith.constant 0 : i32
    %c0_i32_1 = arith.constant 0 : i32
    %c0_i32_2 = arith.constant 0 : i32
    return %c0_i32, %c0_i32_0, %c0_i32_1 : i32, i32, i32
  }
  func.func @transform_3(%arg0: i32) -> (i32, i32) {
    %c0_i32 = arith.constant 0 : i32
    %c0_i32_0 = arith.constant 0 : i32
    %c0_i32_1 = arith.constant 0 : i32
    return %c0_i32, %c0_i32_0 : i32, i32
  }
  func.func @transform_4(%arg0: i32) -> (i32, i32, i32) {
    %c0_i32 = arith.constant 0 : i32
    %c0_i32_0 = arith.constant 0 : i32
    %c0_i32_1 = arith.constant 0 : i32
    return %arg0, %c0_i32, %c0_i32_0 : i32, i32, i32
  }
}

</mosaic_0001>

<llo_original>
// kernel: spectral_norm_conv_forward.2
$region0: #{spectral_norm_conv_forward.2}
  #allocation0 [shape = 'u32[]', space=smem, size = 0x4, offset = 0x4, fixed_abs, tag = 'smem constant byte address 0x4 - core index']
  #allocation1 [shape = 'u32[72,128]{1,0:T(1,128)}', space=vmem, size = 0x9000, scoped, tag = 'internal scratch']
  %s0 = inlined_call_operand.vmem [shape: f32[8,36], index: 0, kind: input, shape index: {}]
  %s1 = inlined_call_operand.vmem [shape: f32[36,1], index: 1, kind: input, shape index: {}]
  %s2 = inlined_call_operand.vmem [shape: f32[8,1], index: 2, kind: output, shape index: {0}]
  %s3 = inlined_call_operand.hbm [shape: f32[1], index: 3, kind: output, shape index: {1}]
  %s4 = inlined_call_operand.hbm [shape: f32[1], index: 4, kind: output, shape index: {2}]
  %5 = xla_tuple %s2, %s3, %s4
  %s6 = sld [smem:[#allocation0]]
  $region34: #{spectral_norm_conv_forward.2} parent=0
    _
  %s8 = ssub.s32 1, %s6
  %s9 = scalar_select 0, %s8, %s6
  $region1: #{spectral_norm_conv_forward.2} parent=0
    #allocation2 [shape = 'u8[512]{0}', space=smem, size = 0x200, scoped, tag = 'output window, operand 1, single buffered']
    #allocation3 [shape = 's32[1]{0}', space=sflag, size = 0x4, scoped, tag = 'scoped memory for spectral_norm_conv_forward.2']
    #allocation4 [shape = 'u8[512]{0}', space=smem, size = 0x200, scoped, tag = 'output window, operand 2, single buffered']
    #allocation5 [shape = 's32[1]{0}', space=sflag, size = 0x4, scoped, tag = 'scoped memory for spectral_norm_conv_forward.2']
    %10 = vsyncpa [#allocation3], 0
    %11 = vsyncpa [#allocation5], 0
    // Predicated region
    $region2: #{spectral_norm_conv_forward.2} parent=1 // pred_check
      _
    $region3: #{spectral_norm_conv_forward.2} parent=1 // pred_check_branch
      %13 = sbr.rel (0) target = $region5
    $region4: #{spectral_norm_conv_forward.2} parent=1 // pred_region
      _
    $region5: #{spectral_norm_conv_forward.2} parent=1 // pred_fallthru
      _
    // Predicated region
    $region6: #{spectral_norm_conv_forward.2} parent=1 // pred_check
      _
    $region7: #{spectral_norm_conv_forward.2} parent=1 // pred_check_branch
      %15 = sbr.rel (0) target = $region9
    $region8: #{spectral_norm_conv_forward.2} parent=1 // pred_region
      _
    $region9: #{spectral_norm_conv_forward.2} parent=1 // pred_fallthru
      _
    %v16 = vld [vmem:[%s0] sm:$0xff]
    %v17 = vld [vmem:[%s1] sm:$0xff]
    %v18 = vld [vmem:[%s1 + $0x8] sm:$0xff]
    %v19 = vld [vmem:[%s1 + $0x10] sm:$0xff]
    %v20 = vld [vmem:[%s1 + $0x18] sm:$0xff]
    %v21 = vld [vmem:[%s1 + $0x20] sm:$0xf]
    %vm22 = vcmask 293888
    %v24 = vsel %vm22, %v16, 0
    %vm26 = vcmask 1043456
    %v28 = vsel %vm26, %v21, 0
    %30 = vmatpush.msra.mxu0 0.0
    %31 = vmatpush.msra.mxu0 0.0
    %32 = vmatpush.msra.mxu0 0.0
    %33 = vmatpush.msra.mxu0 0.0
    %34 = vmatpush.msra.mxu0 0.0
    %35 = vmatpush.msra.mxu0 0.0
    %36 = vmatpush.msra.mxu0 0.0
    %37 = vmatpush.msra.mxu0 0.0
    %38 = vmatpush.msra.mxu0 0.0
    %39 = vmatpush.msra.mxu0 0.0
    %40 = vmatpush.msra.mxu0 0.0
    %41 = vmatpush.msra.mxu0 %v28
    %42 = vmatpush.msra.mxu0 %v20
    %43 = vmatpush.msra.mxu0 %v19
    %44 = vmatpush.msra.mxu0 %v18
    %45 = vmatpush.msra.mxu0 %v17
    %46 = vmatmul.f32.gmra.mxu0 %v24
    %v47 = vpop.f32.mrf.mxu0
    %v48 = vadd.f32 0.0, %v47
    %49 = vdwg.mxu0
    %v50 = vmul.f32 %v48, %v48
    %vm51 = vcmask 7168
    %v52 = vsel %vm51, %v50, 0.0
    %53 = vadd.xlane.f32.xlu0 %v52
    %v54 = vpop.xlane.xlu0 %53
    %v55 = vrot.slane %v54, 4
    %v56 = vadd.f32 %v54, %v55
    %v57 = vrot.slane %v56, 2
    %v58 = vadd.f32 %v56, %v57
    %v59 = vrot.slane %v58, 1
    %v60 = vadd.f32 %v58, %v59
    %s61 = vtos %v60
    %v62 = vstv %s61
    %v63 = vrsqrt.pop %v62
    %v64 = vmul.f32 %v63, %v62
    %v65 = vmul.f32 %v64, %v63
    %v66 = vmul.f32 0.5, %v65
    %v67 = vsub.f32 1.5, %v66
    %v68 = vmul.f32 %v63, %v67
    %v69 = vmul.f32 %v62, %v68
    %vm70 = vcmp.eq.f32.partialorder %v62, inf
    %v71 = vsel %vm70, %v62, %v69
    %vm72 = vcmp.eq.f32.partialorder %v62, 0.0
    %v73 = vand.u32 %v62, 2147483648
    %v74 = vsel %vm72, %v73, %v71
    %s75 = vtos %v74
    %s76 = sadd.f32 %s75, 1e-12
    %v77 = vstv %s76
    %v78 = vrcp.pop %v77
    %v79 = vmul.f32 %v77, %v78
    %v80 = vsub.f32 1.0, %v79
    %v81 = vmul.f32 %v78, %v80
    %v82 = vadd.f32 %v78, %v81
    %vm83 = vweird.f32 %v77
    %vm84 = vweird.f32 %v78
    %vm85 = vmor %vm83, %vm84
    %v86 = vsel %vm85, %v78, %v82
    %v87 = vand.u32 2147483647, %v77
    %vm88 = vcmp.eq.f32.partialorder %v87, 8.507059e+37
    %v89 = vand.u32 %v77, 2147483648
    %v90 = vor.u32 1.1754944e-38, %v89
    %v91 = vsel %vm88, %v90, %v86
    %v92 = vmul.f32 %v48, %v91
    %v93 = vmul.f32 %v92, %v48
    %v94 = vsel %vm51, %v93, 0.0
    %95 = vadd.xlane.f32.xlu0 %v94
    %v96 = vpop.xlane.xlu0 %95
    %v97 = vrot.slane %v96, 4
    %v98 = vadd.f32 %v96, %v97
    %v99 = vrot.slane %v98, 2
    %v100 = vadd.f32 %v98, %v99
    %v101 = vrot.slane %v100, 1
    %v102 = vadd.f32 %v100, %v101
    %s103 = vtos %v102
    %104 = vst.msk [vmem:[%s2] sm:$0xff] %vm51, %v92
    %s105 = scalar_lea.smem [#allocation2], 0
    %106 = sst [smem:[%s105]] %s103
    %v107 = vstv %s103
    %v108 = vrcp.pop %v107
    %v109 = vmul.f32 %v107, %v108
    %v110 = vsub.f32 1.0, %v109
    %v111 = vmul.f32 %v108, %v110
    %v112 = vadd.f32 %v108, %v111
    %vm113 = vweird.f32 %v107
    %vm114 = vweird.f32 %v108
    %vm115 = vmor %vm113, %vm114
    %v116 = vsel %vm115, %v108, %v112
    %v117 = vand.u32 2147483647, %v107
    %vm118 = vcmp.eq.f32.partialorder %v117, 8.507059e+37
    %v119 = vand.u32 %v107, 2147483648
    %v120 = vor.u32 1.1754944e-38, %v119
    %v121 = vsel %vm118, %v120, %v116
    %s122 = vtos %v121
    %s123 = scalar_lea.smem [#allocation4], 0
    %124 = sst [smem:[%s123]] %s122
    // Predicated region
    $region10: #{spectral_norm_conv_forward.2} parent=1 // pred_check
      _
    $region11: #{spectral_norm_conv_forward.2} parent=1 // pred_check_branch
      %126 = sbr.rel (0) target = $region13
    $region12: #{spectral_norm_conv_forward.2} parent=1 // pred_region
      _
    $region13: #{spectral_norm_conv_forward.2} parent=1 // pred_fallthru
      _
    // Predicated region
    $region14: #{spectral_norm_conv_forward.2} parent=1 // pred_check
      _
    $region15: #{spectral_norm_conv_forward.2} parent=1 // pred_check_branch
      %128 = sbr.rel (0) target = $region17
    $region16: #{spectral_norm_conv_forward.2} parent=1 // pred_region
      %130 = vsyncadd [#allocation3], 0
      %s132 = sshll.u32 %s3, 4
      %s133 = int_to_ptr.hbm [resolvable:$true] %s132
      %135 = dma.smem_to_hbm [#allocation2], 16, %s133, [#allocation3]
    $region17: #{spectral_norm_conv_forward.2} parent=1 // pred_fallthru
      _
    // Predicated region
    $region18: #{spectral_norm_conv_forward.2} parent=1 // pred_check
      _
    $region19: #{spectral_norm_conv_forward.2} parent=1 // pred_check_branch
      %137 = sbr.rel (0) target = $region21
    $region20: #{spectral_norm_conv_forward.2} parent=1 // pred_region
      %139 = vsyncadd [#allocation5], 0
      %s141 = sshll.u32 %s4, 4
      %s142 = int_to_ptr.hbm [resolvable:$true] %s141
      %144 = dma.smem_to_hbm [#allocation4], 16, %s142, [#allocation5]
    $region21: #{spectral_norm_conv_forward.2} parent=1 // pred_fallthru
      _
    // Predicated region
    $region22: #{spectral_norm_conv_forward.2} parent=1 // pred_check
      _
    $region23: #{spectral_norm_conv_forward.2} parent=1 // pred_check_branch
      %146 = sbr.rel (0) target = $region25
    $region24: #{spectral_norm_conv_forward.2} parent=1 // pred_region
      _
    $region25: #{spectral_norm_conv_forward.2} parent=1 // pred_fallthru
      _
    // Predicated region
    $region26: #{spectral_norm_conv_forward.2} parent=1 // pred_check
      _
    $region27: #{spectral_norm_conv_forward.2} parent=1 // pred_check_branch
      %148 = sbr.rel (0) target = $region29
    $region28: #{spectral_norm_conv_forward.2} parent=1 // pred_region
      %150 = dma.done [#allocation3], 16
    $region29: #{spectral_norm_conv_forward.2} parent=1 // pred_fallthru
      _
    // Predicated region
    $region30: #{spectral_norm_conv_forward.2} parent=1 // pred_check
      _
    $region31: #{spectral_norm_conv_forward.2} parent=1 // pred_check_branch
      %152 = sbr.rel (0) target = $region33
    $region32: #{spectral_norm_conv_forward.2} parent=1 // pred_region
      %154 = dma.done [#allocation5], 16
    $region33: #{spectral_norm_conv_forward.2} parent=1 // pred_fallthru
      _
    %155 = sfence
    %156 = vsyncpa [#allocation3], 1
    %157 = vsyncpa [#allocation5], 1

// kernel: spectral_norm_conv_forward.3
$region0: #{spectral_norm_conv_forward.3}
  #allocation0 [shape = 'u32[]', space=smem, size = 0x4, offset = 0x4, fixed_abs, tag = 'smem constant byte address 0x4 - core index']
  #allocation1 [shape = 'u32[72,128]{1,0:T(1,128)}', space=vmem, size = 0x9000, scoped, tag = 'internal scratch']
  #allocation2 [shape = 'f32[1]{0:T(128)S(6)}', space=smem, size = 0x200, scoped, tag = 'scoped memory for spectral_norm_conv_forward.3']
  %s0 = inlined_call_operand.<no memory space> [shape: f32[1], index: 0, kind: input, shape index: {}]
  %s1 = inlined_call_operand.vmem [shape: f32[2,4,362], index: 1, kind: input, shape index: {}]
  %s2 = inlined_call_operand.vmem [shape: f32[9,8,4], index: 2, kind: input, shape index: {}]
  %s3 = inlined_call_operand.vmem [shape: f32[8,1], index: 3, kind: input, shape index: {}]
  %s4 = inlined_call_operand.vmem [shape: f32[2,8,324], index: 4, kind: output, shape index: {}]
  %s5 = sld [smem:[#allocation0]]
  $region49: #{spectral_norm_conv_forward.3} parent=0
    _
  %s7 = ssub.s32 1, %s5
  %s8 = scalar_select 0, %s7, %s5
  %9 = sst [smem:[#allocation2]] %s0
  loop: start=0, step=1, limit=4
  $region2: #{spectral_norm_conv_forward.3} parent=0 // loop_pre_header
    _
  $region3: #{spectral_norm_conv_forward.3} parent=0 // loop_header
    %s11 = sphi 0, %s15
    %p12 = scmp.ge.s32.totalorder %s11, 4
    %s19 = sphi 0, %s19
    %s21 = sphi 0, %s19
    %s22 = sphi 0, %s21
    %s36 = sphi 0, %s22
    %s42 = sphi 0, %s44
    %s45 = sphi 0, %s42
    %s46 = sphi 0, %s45
    %s62 = sphi 0, %s46
    %s66 = sphi 0, %s66
    %s68 = sphi 0, %s66
    %s69 = sphi 0, %s68
    %s83 = sphi 0, %s69
    %s87 = sphi 0, %s87
    %s89 = sphi 0, %s87
    %s90 = sphi 0, %s89
    %s104 = sphi 0, %s90
    %s110 = sphi 0, %s112
    %s113 = sphi 0, %s110
    %s114 = sphi 0, %s113
    %s130 = sphi 0, %s114
  $region4: #{spectral_norm_conv_forward.3} parent=0 // loop_header_branch
    %14 = sbr.rel (%p12) target = $region8
  $region5: #{spectral_norm_conv_forward.3} parent=0 // loop_body
    %s16 = ssub.s32 %s11, 1
    %s17 = ssub.s32 %s11, 2
    %s18 = sadd.s32 %s11, 1
    %s20 = sadd.s32 %s19, 1
    %p23 = scmp.eq.s32.totalorder %s11, 1
    %p24 = scmp.ne.s32.totalorder %s19, %s21
    %p25 = scmp.eq.s32.totalorder %s11, 0
    %p26 = por %p24, %p25
    %p27 = scmp.ne.s32.totalorder %s19, %s21
    %p28 = scmp.eq.s32.totalorder %s16, 1
    %p29 = por %p27, %p28
    %p30 = scmp.ne.s32.totalorder %s21, %s22
    %p31 = scmp.eq.s32.totalorder %s16, 0
    %p32 = por %p30, %p31
    %p33 = scmp.ne.s32.totalorder %s21, %s22
    %p34 = scmp.eq.s32.totalorder %s17, 1
    %p35 = por %p33, %p34
    %p37 = scmp.ne.s32.totalorder %s22, %s36
    %p38 = scmp.eq.s32.totalorder %s17, 0
    %p39 = por %p37, %p38
    %s40 = ssub.s32 %s11, %s18
    %p41 = scmp.eq.s32.totalorder %s40, 0
    %s43 = sadd.s32 %s42, 1
    %s44 = scalar_select %p41, %s42, %s43
    %p47 = pneg %p41
    %p48 = scmp.eq.s32.totalorder %s11, 1
    %p49 = por %p47, %p48
    %p50 = scmp.ne.s32.totalorder %s42, %s45
    %p51 = scmp.eq.s32.totalorder %s11, 0
    %p52 = por %p50, %p51
    %p53 = scmp.ne.s32.totalorder %s42, %s45
    %p54 = scmp.eq.s32.totalorder %s16, 1
    %p55 = por %p53, %p54
    %p56 = scmp.ne.s32.totalorder %s45, %s46
    %p57 = scmp.eq.s32.totalorder %s16, 0
    %p58 = por %p56, %p57
    %p59 = scmp.ne.s32.totalorder %s45, %s46
    %p60 = scmp.eq.s32.totalorder %s17, 1
    %p61 = por %p59, %p60
    %p63 = scmp.ne.s32.totalorder %s46, %s62
    %p64 = scmp.eq.s32.totalorder %s17, 0
    %p65 = por %p63, %p64
    %s67 = sadd.s32 %s66, 1
    %p70 = scmp.eq.s32.totalorder %s11, 1
    %p71 = scmp.ne.s32.totalorder %s66, %s68
    %p72 = scmp.eq.s32.totalorder %s11, 0
    %p73 = por %p71, %p72
    %p74 = scmp.ne.s32.totalorder %s66, %s68
    %p75 = scmp.eq.s32.totalorder %s16, 1
    %p76 = por %p74, %p75
    %p77 = scmp.ne.s32.totalorder %s68, %s69
    %p78 = scmp.eq.s32.totalorder %s16, 0
    %p79 = por %p77, %p78
    %p80 = scmp.ne.s32.totalorder %s68, %s69
    %p81 = scmp.eq.s32.totalorder %s17, 1
    %p82 = por %p80, %p81
    %p84 = scmp.ne.s32.totalorder %s69, %s83
    %p85 = scmp.eq.s32.totalorder %s17, 0
    %p86 = por %p84, %p85
    %s88 = sadd.s32 %s87, 1
    %p91 = scmp.eq.s32.totalorder %s11, 1
    %p92 = scmp.ne.s32.totalorder %s87, %s89
    %p93 = scmp.eq.s32.totalorder %s11, 0
    %p94 = por %p92, %p93
    %p95 = scmp.ne.s32.totalorder %s87, %s89
    %p96 = scmp.eq.s32.totalorder %s16, 1
    %p97 = por %p95, %p96
    %p98 = scmp.ne.s32.totalorder %s89, %s90
    %p99 = scmp.eq.s32.totalorder %s16, 0
    %p100 = por %p98, %p99
    %p101 = scmp.ne.s32.totalorder %s89, %s90
    %p102 = scmp.eq.s32.totalorder %s17, 1
    %p103 = por %p101, %p102
    %p105 = scmp.ne.s32.totalorder %s90, %s104
    %p106 = scmp.eq.s32.totalorder %s17, 0
    %p107 = por %p105, %p106
    %s108 = ssub.s32 %s11, %s18
    %p109 = scmp.eq.s32.totalorder %s108, 0
    %s111 = sadd.s32 %s110, 1
    %s112 = scalar_select %p109, %s110, %s111
    %p115 = pneg %p109
    %p116 = scmp.eq.s32.totalorder %s11, 1
    %p117 = por %p115, %p116
    %p118 = scmp.ne.s32.totalorder %s110, %s113
    %p119 = scmp.eq.s32.totalorder %s11, 0
    %p120 = por %p118, %p119
    %p121 = scmp.ne.s32.totalorder %s110, %s113
    %p122 = scmp.eq.s32.totalorder %s16, 1
    %p123 = por %p121, %p122
    %p124 = scmp.ne.s32.totalorder %s113, %s114
    %p125 = scmp.eq.s32.totalorder %s16, 0
    %p126 = por %p124, %p125
    %p127 = scmp.ne.s32.totalorder %s113, %s114
    %p128 = scmp.eq.s32.totalorder %s17, 1
    %p129 = por %p127, %p128
    %p131 = scmp.ne.s32.totalorder %s114, %s130
    %p132 = scmp.eq.s32.totalorder %s17, 0
    %p133 = por %p131, %p132
    %p134 = scmp.le.s32.totalorder 1, %s11
    %p135 = scmp.lt.s32.totalorder %s11, 3
    %p136 = pnand %p134, %p135
    %p137 = pneg %p136
    // Predicated region
    $region9: #{spectral_norm_conv_forward.3} parent=5 // pred_check
      _
    $region10: #{spectral_norm_conv_forward.3} parent=5 // pred_check_branch
      %139 = sbr.rel (%p136) target = $region12
    $region11: #{spectral_norm_conv_forward.3} parent=5 // pred_region
      %s140 = ssub.s32 %s11, 1
      // Predicated region
      $region13: #{spectral_norm_conv_forward.3} parent=11 // pred_check
        %p141 = pneg %p32
      $region14: #{spectral_norm_conv_forward.3} parent=11 // pred_check_branch
        %143 = sbr.rel (%p141) target = $region16
      $region15: #{spectral_norm_conv_forward.3} parent=11 // pred_region
        _
      $region16: #{spectral_norm_conv_forward.3} parent=11 // pred_fallthru
        _
      // Predicated region
      $region17: #{spectral_norm_conv_forward.3} parent=11 // pred_check
        %p144 = pneg %p79
      $region18: #{spectral_norm_conv_forward.3} parent=11 // pred_check_branch
        %146 = sbr.rel (%p144) target = $region20
      $region19: #{spectral_norm_conv_forward.3} parent=11 // pred_region
        _
      $region20: #{spectral_norm_conv_forward.3} parent=11 // pred_fallthru
        _
      // Predicated region
      $region21: #{spectral_norm_conv_forward.3} parent=11 // pred_check
        %p147 = pneg %p100
      $region22: #{spectral_norm_conv_forward.3} parent=11 // pred_check_branch
        %149 = sbr.rel (%p147) target = $region24
      $region23: #{spectral_norm_conv_forward.3} parent=11 // pred_region
        _
      $region24: #{spectral_norm_conv_forward.3} parent=11 // pred_fallthru
        _
    $region12: #{spectral_norm_conv_forward.3} parent=5 // pred_fallthru
      _
    %p150 = scmp.lt.s32.totalorder %s11, 2
    // Predicated region
    $region25: #{spectral_norm_conv_forward.3} parent=5 // pred_check
      %p151 = pneg %p150
    $region26: #{spectral_norm_conv_forward.3} parent=5 // pred_check_branch
      %153 = sbr.rel (%p151) target = $region28
    $region27: #{spectral_norm_conv_forward.3} parent=5 // pred_region
      // Predicated region
      $region29: #{spectral_norm_conv_forward.3} parent=27 // pred_check
        %p154 = pneg %p52
      $region30: #{spectral_norm_conv_forward.3} parent=27 // pred_check_branch
        %156 = sbr.rel (%p154) target = $region32
      $region31: #{spectral_norm_conv_forward.3} parent=27 // pred_region
        %p157 = scmp.lt.s32.totalorder %s11, 1
        %s158 = scalar_select %p157, %s11, 1
        %s159 = smul.addr %s158, 3
        %s160 = smul.addr %s159, 4
        %s161 = scalar_lea.vmem %s1, %s160
      $region32: #{spectral_norm_conv_forward.3} parent=27 // pred_fallthru
        _
    $region28: #{spectral_norm_conv_forward.3} parent=5 // pred_fallthru
      _
    %p162 = scmp.le.s32.totalorder 1, %s11
    %p163 = scmp.lt.s32.totalorder %s11, 3
    %p164 = pnand %p162, %p163
    %p165 = pneg %p164
    // Predicated region
    $region33: #{spectral_norm_conv_forward.3} parent=5 // pred_check
      _
    $region34: #{spectral_norm_conv_forward.3} parent=5 // pred_check_branch
      %167 = sbr.rel (%p164) target = $region36
    $region35: #{spectral_norm_conv_forward.3} parent=5 // pred_region
      %s168 = ssub.s32 %s11, 1
      %p169 = pneg %p32
      %p170 = pneg %p29
      %p171 = scmp.lt.s32.totalorder %s16, 1
      %s172 = scalar_select %p171, %s16, 1
      %s173 = smul.addr %s172, 3
      %s174 = smul.addr %s173, 4
      %s175 = scalar_lea.vmem %s1, %s174
      %p176 = pneg %p58
      %p177 = pneg %p55
      %p178 = pneg %p79
      %p179 = pneg %p76
      %p180 = pneg %p100
      %p181 = pneg %p97
      %p182 = pneg %p126
      %p183 = pneg %p123
      %p184 = scmp.lt.s32.totalorder %s16, 1
      %s185 = scalar_select %p184, %s16, 1
      %s186 = smul.addr %s185, 3
      %s187 = smul.addr %s186, 8
      %s188 = scalar_lea.vmem %s4, %s187
      %p189 = scmp.lt.s32.totalorder %s16, 1
      %s190 = scalar_select %p189, %s16, 1
      %s191 = smul.addr %s190, 3
      %s192 = smul.addr %s191, 4
      %s193 = scalar_lea.vmem %s1, %s192
      %p194 = scmp.lt.s32.totalorder %s16, 1
      %s195 = scalar_select %p194, %s16, 1
      %s196 = smul.addr %s195, 3
      %s197 = smul.addr %s196, 8
      %s198 = scalar_lea.vmem %s4, %s197
      %v199 = vld [vmem:[%s193] sm:$0xff]
      %v200 = vld [vmem:[%s193 + $0x8] sm:$0xf]
      %v201 = vld [vmem:[%s2] sm:$0xff]
      %s202 = scalar_lea.vmem %s2, 8
      %v203 = vld [vmem:[%s202] sm:$0xff]
      %206 = vst [vmem:[#allocation1] ss:$2 sm:$0xff] %v199
      %s207 = scalar_lea.vmem [#allocation1], 16
      %208 = vst [vmem:[%s207] ss:$2 sm:$0xff] %v200
      %v209 = vld.sshfl [vmem:[#allocation1] sm:$0xff pattern:$0x75316420]
      %v210 = vld.sshfl [vmem:[#allocation1 + $0x8] sm:$0xff pattern:$0x75316420]
      %v211 = vld.sshfl [vmem:[#allocation1 + $0x10] sm:$0xff pattern:$0x75316420]
      %212 = vrot.lane.b32.xlu0 %v209, 127
      %v213 = vpop.permute.xlu0 %212
      %214 = vrot.lane.b32.xlu0 %v210, 127
      %v215 = vpop.permute.xlu0 %214
      %216 = vrot.lane.b32.xlu0 %v211, 127
      %v217 = vpop.permute.xlu0 %216
      %vm218 = vcmask 1039360
      %v219 = vsel %vm218, %v213, %v215
      %v220 = vsel %vm218, %v215, %v217
      %vm221 = vcmask 31744
      %v223 = vsel %vm221, %v203, 0
      %vm225 = vcmask 1043456
      %v226 = vsel %vm225, %v219, 0
      %v228 = vsel %vm225, %v220, 0
      %v230 = vsel %vm225, %v217, 0
      %232 = vmatpush.msra.mxu0 0.0
      %233 = vmatpush.msra.mxu0 0.0
      %234 = vmatpush.msra.mxu0 0.0
      %235 = vmatpush.msra.mxu0 0.0
      %236 = vmatpush.msra.mxu0 0.0
      %237 = vmatpush.msra.mxu0 0.0
      %238 = vmatpush.msra.mxu0 0.0
      %239 = vmatpush.msra.mxu0 0.0
      %240 = vmatpush.msra.mxu0 0.0
      %241 = vmatpush.msra.mxu0 0.0
      %242 = vmatpush.msra.mxu0 0.0
      %243 = vmatpush.msra.mxu0 0.0
      %244 = vmatpush.msra.mxu0 0.0
      %245 = vmatpush.msra.mxu0 0.0
      %246 = vmatpush.msra.mxu0 0.0
      %247 = vmatpush.msra.mxu0 %v226
      %248 = vmatmul.f32.gmra.mxu0 %v223
      %v249 = vpop.f32.mrf.mxu0
      %v250 = vadd.f32 0.0, %v249
      %251 = vdwg.mxu0
      %252 = vmatpush.msra.mxu0 0.0
      %253 = vmatpush.msra.mxu0 0.0
      %254 = vmatpush.msra.mxu0 0.0
      %255 = vmatpush.msra.mxu0 0.0
      %256 = vmatpush.msra.mxu0 0.0
      %257 = vmatpush.msra.mxu0 0.0
      %258 = vmatpush.msra.mxu0 0.0
      %259 = vmatpush.msra.mxu0 0.0
      %260 = vmatpush.msra.mxu0 0.0
      %261 = vmatpush.msra.mxu0 0.0
      %262 = vmatpush.msra.mxu0 0.0
      %263 = vmatpush.msra.mxu0 0.0
      %264 = vmatpush.msra.mxu0 0.0
      %265 = vmatpush.msra.mxu0 0.0
      %266 = vmatpush.msra.mxu0 0.0
      %267 = vmatpush.msra.mxu0 %v228
      %268 = vmatmul.f32.gmra.mxu0 %v223
      %v269 = vpop.f32.mrf.mxu0
      %v270 = vadd.f32 0.0, %v269
      %271 = vdwg.mxu0
      %272 = vmatpush.msra.mxu0 0.0
      %273 = vmatpush.msra.mxu0 0.0
      %274 = vmatpush.msra.mxu0 0.0
      %275 = vmatpush.msra.mxu0 0.0
      %276 = vmatpush.msra.mxu0 0.0
      %277 = vmatpush.msra.mxu0 0.0
      %278 = vmatpush.msra.mxu0 0.0
      %279 = vmatpush.msra.mxu0 0.0
      %280 = vmatpush.msra.mxu0 0.0
      %281 = vmatpush.msra.mxu0 0.0
      %282 = vmatpush.msra.mxu0 0.0
      %283 = vmatpush.msra.mxu0 0.0
      %284 = vmatpush.msra.mxu0 0.0
      %285 = vmatpush.msra.mxu0 0.0
      %286 = vmatpush.msra.mxu0 0.0
      %287 = vmatpush.msra.mxu0 %v230
      %288 = vmatmul.f32.gmra.mxu0 %v223
      %v289 = vpop.f32.mrf.mxu0
      %v290 = vadd.f32 0.0, %v289
      %291 = vdwg.mxu0
      %292 = vst [vmem:[#allocation1] ss:$2 sm:$0xff] %v199
      %s293 = scalar_lea.vmem [#allocation1], 16
      %294 = vst [vmem:[%s293] ss:$2 sm:$0xff] %v200
      %v295 = vld.sshfl [vmem:[#allocation1] sm:$0xff pattern:$0x75316420]
      %v296 = vld.sshfl [vmem:[#allocation1 + $0x8] sm:$0xff pattern:$0x75316420]
      %v297 = vld.sshfl [vmem:[#allocation1 + $0x10] sm:$0xff pattern:$0x75316420]
      %v299 = vsel %vm221, %v201, 0
      %v301 = vsel %vm225, %v295, 0
      %v303 = vsel %vm225, %v296, 0
      %v305 = vsel %vm225, %v297, 0
      %307 = vmatpush.msra.mxu0 0.0
      %308 = vmatpush.msra.mxu0 0.0
      %309 = vmatpush.msra.mxu0 0.0
      %310 = vmatpush.msra.mxu0 0.0
      %311 = vmatpush.msra.mxu0 0.0
      %312 = vmatpush.msra.mxu0 0.0
      %313 = vmatpush.msra.mxu0 0.0
      %314 = vmatpush.msra.mxu0 0.0
      %315 = vmatpush.msra.mxu0 0.0
      %316 = vmatpush.msra.mxu0 0.0
      %317 = vmatpush.msra.mxu0 0.0
      %318 = vmatpush.msra.mxu0 0.0
      %319 = vmatpush.msra.mxu0 0.0
      %320 = vmatpush.msra.mxu0 0.0
      %321 = vmatpush.msra.mxu0 0.0
      %322 = vmatpush.msra.mxu0 %v301
      %323 = vmatmul.f32.gmra.mxu0 %v299
      %v324 = vpop.f32.mrf.mxu0
      %v325 = vadd.f32 %v250, %v324
      %326 = vdwg.mxu0
      %327 = vmatpush.msra.mxu0 0.0
      %328 = vmatpush.msra.mxu0 0.0
      %329 = vmatpush.msra.mxu0 0.0
      %330 = vmatpush.msra.mxu0 0.0
      %331 = vmatpush.msra.mxu0 0.0
      %332 = vmatpush.msra.mxu0 0.0
      %333 = vmatpush.msra.mxu0 0.0
      %334 = vmatpush.msra.mxu0 0.0
      %335 = vmatpush.msra.mxu0 0.0
      %336 = vmatpush.msra.mxu0 0.0
      %337 = vmatpush.msra.mxu0 0.0
      %338 = vmatpush.msra.mxu0 0.0
      %339 = vmatpush.msra.mxu0 0.0
      %340 = vmatpush.msra.mxu0 0.0
      %341 = vmatpush.msra.mxu0 0.0
      %342 = vmatpush.msra.mxu0 %v303
      %343 = vmatmul.f32.gmra.mxu0 %v299
      %v344 = vpop.f32.mrf.mxu0
      %v345 = vadd.f32 %v270, %v344
      %346 = vdwg.mxu0
      %347 = vmatpush.msra.mxu0 0.0
      %348 = vmatpush.msra.mxu0 0.0
      %349 = vmatpush.msra.mxu0 0.0
      %350 = vmatpush.msra.mxu0 0.0
      %351 = vmatpush.msra.mxu0 0.0
      %352 = vmatpush.msra.mxu0 0.0
      %353 = vmatpush.msra.mxu0 0.0
      %354 = vmatpush.msra.mxu0 0.0
      %355 = vmatpush.msra.mxu0 0.0
      %356 = vmatpush.msra.mxu0 0.0
      %357 = vmatpush.msra.mxu0 0.0
      %358 = vmatpush.msra.mxu0 0.0
      %359 = vmatpush.msra.mxu0 0.0
      %360 = vmatpush.msra.mxu0 0.0
      %361 = vmatpush.msra.mxu0 0.0
      %362 = vmatpush.msra.mxu0 %v305
      %363 = vmatmul.f32.gmra.mxu0 %v299
      %v364 = vpop.f32.mrf.mxu0
      %v365 = vadd.f32 %v290, %v364
      %366 = vdwg.mxu0
      %s367 = scalar_lea.vmem %s2, 16
      %v368 = vld [vmem:[%s367] sm:$0xff]
      %369 = vst [vmem:[#allocation1] ss:$2 sm:$0xff] %v199
      %s370 = scalar_lea.vmem [#allocation1], 16
      %371 = vst [vmem:[%s370] ss:$2 sm:$0xff] %v200
      %v372 = vld.sshfl [vmem:[#allocation1] sm:$0xff pattern:$0x75316420]
      %v373 = vld.sshfl [vmem:[#allocation1 + $0x8] sm:$0xff pattern:$0x75316420]
      %v374 = vld.sshfl [vmem:[#allocation1 + $0x10] sm:$0xff pattern:$0x75316420]
      %375 = vrot.lane.b32.xlu0 %v372, 126
      %v376 = vpop.permute.xlu0 %375
      %377 = vrot.lane.b32.xlu0 %v373, 126
      %v378 = vpop.permute.xlu0 %377
      %379 = vrot.lane.b32.xlu0 %v374, 126
      %v380 = vpop.permute.xlu0 %379
      %vm381 = vcmask 1031168
      %v382 = vsel %vm381, %v376, %v378
      %v383 = vsel %vm381, %v378, %v380
      %v385 = vsel %vm221, %v368, 0
      %v387 = vsel %vm225, %v382, 0
      %v389 = vsel %vm225, %v383, 0
      %v391 = vsel %vm225, %v380, 0
      %393 = vmatpush.msra.mxu0 0.0
      %394 = vmatpush.msra.mxu0 0.0
      %395 = vmatpush.msra.mxu0 0.0
      %396 = vmatpush.msra.mxu0 0.0
      %397 = vmatpush.msra.mxu0 0.0
      %398 = vmatpush.msra.mxu0 0.0
      %399 = vmatpush.msra.mxu0 0.0
      %400 = vmatpush.msra.mxu0 0.0
      %401 = vmatpush.msra.mxu0 0.0
      %402 = vmatpush.msra.mxu0 0.0
      %403 = vmatpush.msra.mxu0 0.0
      %404 = vmatpush.msra.mxu0 0.0
      %405 = vmatpush.msra.mxu0 0.0
      %406 = vmatpush.msra.mxu0 0.0
      %407 = vmatpush.msra.mxu0 0.0
      %408 = vmatpush.msra.mxu0 %v387
      %409 = vmatmul.f32.gmra.mxu0 %v385
      %v410 = vpop.f32.mrf.mxu0
      %v411 = vadd.f32 0.0, %v410
      %412 = vdwg.mxu0
      %413 = vmatpush.msra.mxu0 0.0
      %414 = vmatpush.msra.mxu0 0.0
      %415 = vmatpush.msra.mxu0 0.0
      %416 = vmatpush.msra.mxu0 0.0
      %417 = vmatpush.msra.mxu0 0.0
      %418 = vmatpush.msra.mxu0 0.0
      %419 = vmatpush.msra.mxu0 0.0
      %420 = vmatpush.msra.mxu0 0.0
      %421 = vmatpush.msra.mxu0 0.0
      %422 = vmatpush.msra.mxu0 0.0
      %423 = vmatpush.msra.mxu0 0.0
      %424 = vmatpush.msra.mxu0 0.0
      %425 = vmatpush.msra.mxu0 0.0
      %426 = vmatpush.msra.mxu0 0.0
      %427 = vmatpush.msra.mxu0 0.0
      %428 = vmatpush.msra.mxu0 %v389
      %429 = vmatmul.f32.gmra.mxu0 %v385
      %v430 = vpop.f32.mrf.mxu0
      %v431 = vadd.f32 0.0, %v430
      %432 = vdwg.mxu0
      %433 = vmatpush.msra.mxu0 0.0
      %434 = vmatpush.msra.mxu0 0.0
      %435 = vmatpush.msra.mxu0 0.0
      %436 = vmatpush.msra.mxu0 0.0
      %437 = vmatpush.msra.mxu0 0.0
      %438 = vmatpush.msra.mxu0 0.0
      %439 = vmatpush.msra.mxu0 0.0
      %440 = vmatpush.msra.mxu0 0.0
      %441 = vmatpush.msra.mxu0 0.0
      %442 = vmatpush.msra.mxu0 0.0
      %443 = vmatpush.msra.mxu0 0.0
      %444 = vmatpush.msra.mxu0 0.0
      %445 = vmatpush.msra.mxu0 0.0
      %446 = vmatpush.msra.mxu0 0.0
      %447 = vmatpush.msra.mxu0 0.0
      %448 = vmatpush.msra.mxu0 %v391
      %449 = vmatmul.f32.gmra.mxu0 %v385
      %v450 = vpop.f32.mrf.mxu0
      %v451 = vadd.f32 0.0, %v450
      %452 = vdwg.mxu0
      %v453 = vadd.f32 %v325, %v411
      %v454 = vadd.f32 %v345, %v431
      %v455 = vadd.f32 %v365, %v451
      %s456 = scalar_lea.vmem %s2, 24
      %v457 = vld [vmem:[%s456] sm:$0xff]
      %458 = vst [vmem:[#allocation1] ss:$2 sm:$0xff] %v199
      %s459 = scalar_lea.vmem [#allocation1], 16
      %460 = vst [vmem:[%s459] ss:$2 sm:$0xff] %v200
      %v461 = vld.sshfl [vmem:[#allocation1] sm:$0xff pattern:$0x75316420]
      %v462 = vld.sshfl [vmem:[#allocation1 + $0x8] sm:$0xff pattern:$0x75316420]
      %v463 = vld.sshfl [vmem:[#allocation1 + $0x10] sm:$0xff pattern:$0x75316420]
      %464 = vrot.lane.b32.xlu0 %v461, 110
      %v465 = vpop.permute.xlu0 %464
      %466 = vrot.lane.b32.xlu0 %v462, 110
      %v467 = vpop.permute.xlu0 %466
      %468 = vrot.lane.b32.xlu0 %v463, 110
      %v469 = vpop.permute.xlu0 %468
      %vm470 = vcmask 900096
      %v471 = vsel %vm470, %v465, %v467
      %v472 = vsel %vm470, %v467, %v469
      %v474 = vsel %vm221, %v457, 0
      %v476 = vsel %vm225, %v471, 0
      %v478 = vsel %vm225, %v472, 0
      %v480 = vsel %vm225, %v469, 0
      %482 = vmatpush.msra.mxu0 0.0
      %483 = vmatpush.msra.mxu0 0.0
      %484 = vmatpush.msra.mxu0 0.0
      %485 = vmatpush.msra.mxu0 0.0
      %486 = vmatpush.msra.mxu0 0.0
      %487 = vmatpush.msra.mxu0 0.0
      %488 = vmatpush.msra.mxu0 0.0
      %489 = vmatpush.msra.mxu0 0.0
      %490 = vmatpush.msra.mxu0 0.0
      %491 = vmatpush.msra.mxu0 0.0
      %492 = vmatpush.msra.mxu0 0.0
      %493 = vmatpush.msra.mxu0 0.0
      %494 = vmatpush.msra.mxu0 0.0
      %495 = vmatpush.msra.mxu0 0.0
      %496 = vmatpush.msra.mxu0 0.0
      %497 = vmatpush.msra.mxu0 %v476
      %498 = vmatmul.f32.gmra.mxu0 %v474
      %v499 = vpop.f32.mrf.mxu0
      %v500 = vadd.f32 0.0, %v499
      %501 = vdwg.mxu0
      %502 = vmatpush.msra.mxu0 0.0
      %503 = vmatpush.msra.mxu0 0.0
      %504 = vmatpush.msra.mxu0 0.0
      %505 = vmatpush.msra.mxu0 0.0
      %506 = vmatpush.msra.mxu0 0.0
      %507 = vmatpush.msra.mxu0 0.0
      %508 = vmatpush.msra.mxu0 0.0
      %509 = vmatpush.msra.mxu0 0.0
      %510 = vmatpush.msra.mxu0 0.0
      %511 = vmatpush.msra.mxu0 0.0
      %512 = vmatpush.msra.mxu0 0.0
      %513 = vmatpush.msra.mxu0 0.0
      %514 = vmatpush.msra.mxu0 0.0
      %515 = vmatpush.msra.mxu0 0.0
      %516 = vmatpush.msra.mxu0 0.0
      %517 = vmatpush.msra.mxu0 %v478
      %518 = vmatmul.f32.gmra.mxu0 %v474
      %v519 = vpop.f32.mrf.mxu0
      %v520 = vadd.f32 0.0, %v519
      %521 = vdwg.mxu0
      %522 = vmatpush.msra.mxu0 0.0
      %523 = vmatpush.msra.mxu0 0.0
      %524 = vmatpush.msra.mxu0 0.0
      %525 = vmatpush.msra.mxu0 0.0
      %526 = vmatpush.msra.mxu0 0.0
      %527 = vmatpush.msra.mxu0 0.0
      %528 = vmatpush.msra.mxu0 0.0
      %529 = vmatpush.msra.mxu0 0.0
      %530 = vmatpush.msra.mxu0 0.0
      %531 = vmatpush.msra.mxu0 0.0
      %532 = vmatpush.msra.mxu0 0.0
      %533 = vmatpush.msra.mxu0 0.0
      %534 = vmatpush.msra.mxu0 0.0
      %535 = vmatpush.msra.mxu0 0.0
      %536 = vmatpush.msra.mxu0 0.0
      %537 = vmatpush.msra.mxu0 %v480
      %538 = vmatmul.f32.gmra.mxu0 %v474
      %v539 = vpop.f32.mrf.mxu0
      %v540 = vadd.f32 0.0, %v539
      %541 = vdwg.mxu0
      %v542 = vadd.f32 %v453, %v500
      %v543 = vadd.f32 %v454, %v520
      %v544 = vadd.f32 %v455, %v540
      %s545 = scalar_lea.vmem %s2, 32
      %v546 = vld [vmem:[%s545] sm:$0xff]
      %547 = vst [vmem:[#allocation1] ss:$2 sm:$0xff] %v199
      %s548 = scalar_lea.vmem [#allocation1], 16
      %549 = vst [vmem:[%s548] ss:$2 sm:$0xff] %v200
      %v550 = vld.sshfl [vmem:[#allocation1] sm:$0xff pattern:$0x75316420]
      %v551 = vld.sshfl [vmem:[#allocation1 + $0x8] sm:$0xff pattern:$0x75316420]
      %v552 = vld.sshfl [vmem:[#allocation1 + $0x10] sm:$0xff pattern:$0x75316420]
      %553 = vrot.lane.b32.xlu0 %v550, 109
      %v554 = vpop.permute.xlu0 %553
      %555 = vrot.lane.b32.xlu0 %v551, 109
      %v556 = vpop.permute.xlu0 %555
      %557 = vrot.lane.b32.xlu0 %v552, 109
      %v558 = vpop.permute.xlu0 %557
      %vm559 = vcmask 891904
      %v560 = vsel %vm559, %v554, %v556
      %v561 = vsel %vm559, %v556, %v558
      %v563 = vsel %vm221, %v546, 0
      %v565 = vsel %vm225, %v560, 0
      %v567 = vsel %vm225, %v561, 0
      %v569 = vsel %vm225, %v558, 0
      %571 = vmatpush.msra.mxu0 0.0
      %572 = vmatpush.msra.mxu0 0.0
      %573 = vmatpush.msra.mxu0 0.0
      %574 = vmatpush.msra.mxu0 0.0
      %575 = vmatpush.msra.mxu0 0.0
      %576 = vmatpush.msra.mxu0 0.0
      %577 = vmatpush.msra.mxu0 0.0
      %578 = vmatpush.msra.mxu0 0.0
      %579 = vmatpush.msra.mxu0 0.0
      %580 = vmatpush.msra.mxu0 0.0
      %581 = vmatpush.msra.mxu0 0.0
      %582 = vmatpush.msra.mxu0 0.0
      %583 = vmatpush.msra.mxu0 0.0
      %584 = vmatpush.msra.mxu0 0.0
      %585 = vmatpush.msra.mxu0 0.0
      %586 = vmatpush.msra.mxu0 %v565
      %587 = vmatmul.f32.gmra.mxu0 %v563
      %v588 = vpop.f32.mrf.mxu0
      %v589 = vadd.f32 0.0, %v588
      %590 = vdwg.mxu0
      %591 = vmatpush.msra.mxu0 0.0
      %592 = vmatpush.msra.mxu0 0.0
      %593 = vmatpush.msra.mxu0 0.0
      %594 = vmatpush.msra.mxu0 0.0
      %595 = vmatpush.msra.mxu0 0.0
      %596 = vmatpush.msra.mxu0 0.0
      %597 = vmatpush.msra.mxu0 0.0
      %598 = vmatpush.msra.mxu0 0.0
      %599 = vmatpush.msra.mxu0 0.0
      %600 = vmatpush.msra.mxu0 0.0
      %601 = vmatpush.msra.mxu0 0.0
      %602 = vmatpush.msra.mxu0 0.0
      %603 = vmatpush.msra.mxu0 0.0
      %604 = vmatpush.msra.mxu0 0.0
      %605 = vmatpush.msra.mxu0 0.0
      %606 = vmatpush.msra.mxu0 %v567
      %607 = vmatmul.f32.gmra.mxu0 %v563
      %v608 = vpop.f32.mrf.mxu0
      %v609 = vadd.f32 0.0, %v608
      %610 = vdwg.mxu0
      %611 = vmatpush.msra.mxu0 0.0
      %612 = vmatpush.msra.mxu0 0.0
      %613 = vmatpush.msra.mxu0 0.0
      %614 = vmatpush.msra.mxu0 0.0
      %615 = vmatpush.msra.mxu0 0.0
      %616 = vmatpush.msra.mxu0 0.0
      %617 = vmatpush.msra.mxu0 0.0
      %618 = vmatpush.msra.mxu0 0.0
      %619 = vmatpush.msra.mxu0 0.0
      %620 = vmatpush.msra.mxu0 0.0
      %621 = vmatpush.msra.mxu0 0.0
      %622 = vmatpush.msra.mxu0 0.0
      %623 = vmatpush.msra.mxu0 0.0
      %624 = vmatpush.msra.mxu0 0.0
      %625 = vmatpush.msra.mxu0 0.0
      %626 = vmatpush.msra.mxu0 %v569
      %627 = vmatmul.f32.gmra.mxu0 %v563
      %v628 = vpop.f32.mrf.mxu0
      %v629 = vadd.f32 0.0, %v628
      %630 = vdwg.mxu0
      %v631 = vadd.f32 %v542, %v589
      %v632 = vadd.f32 %v543, %v609
      %v633 = vadd.f32 %v544, %v629
      %s634 = scalar_lea.vmem %s2, 40
      %v635 = vld [vmem:[%s634] sm:$0xff]
      %636 = vst [vmem:[#allocation1] ss:$2 sm:$0xff] %v199
      %s637 = scalar_lea.vmem [#allocation1], 16
      %638 = vst [vmem:[%s637] ss:$2 sm:$0xff] %v200
      %v639 = vld.sshfl [vmem:[#allocation1] sm:$0xff pattern:$0x75316420]
      %v640 = vld.sshfl [vmem:[#allocation1 + $0x8] sm:$0xff pattern:$0x75316420]
      %v641 = vld.sshfl [vmem:[#allocation1 + $0x10] sm:$0xff pattern:$0x75316420]
      %642 = vrot.lane.b32.xlu0 %v639, 108
      %v643 = vpop.permute.xlu0 %642
      %644 = vrot.lane.b32.xlu0 %v640, 108
      %v645 = vpop.permute.xlu0 %644
      %646 = vrot.lane.b32.xlu0 %v641, 108
      %v647 = vpop.permute.xlu0 %646
      %vm648 = vcmask 883712
      %v649 = vsel %vm648, %v643, %v645
      %v650 = vsel %vm648, %v645, %v647
      %v652 = vsel %vm221, %v635, 0
      %v654 = vsel %vm225, %v649, 0
      %v656 = vsel %vm225, %v650, 0
      %v658 = vsel %vm225, %v647, 0
      %660 = vmatpush.msra.mxu0 0.0
      %661 = vmatpush.msra.mxu0 0.0
      %662 = vmatpush.msra.mxu0 0.0
      %663 = vmatpush.msra.mxu0 0.0
      %664 = vmatpush.msra.mxu0 0.0
      %665 = vmatpush.msra.mxu0 0.0
      %666 = vmatpush.msra.mxu0 0.0
      %667 = vmatpush.msra.mxu0 0.0
      %668 = vmatpush.msra.mxu0 0.0
      %669 = vmatpush.msra.mxu0 0.0
      %670 = vmatpush.msra.mxu0 0.0
      %671 = vmatpush.msra.mxu0 0.0
      %672 = vmatpush.msra.mxu0 0.0
      %673 = vmatpush.msra.mxu0 0.0
      %674 = vmatpush.msra.mxu0 0.0
      %675 = vmatpush.msra.mxu0 %v654
      %676 = vmatmul.f32.gmra.mxu0 %v652
      %v677 = vpop.f32.mrf.mxu0
      %v678 = vadd.f32 0.0, %v677
      %679 = vdwg.mxu0
      %680 = vmatpush.msra.mxu0 0.0
      %681 = vmatpush.msra.mxu0 0.0
      %682 = vmatpush.msra.mxu0 0.0
      %683 = vmatpush.msra.mxu0 0.0
      %684 = vmatpush.msra.mxu0 0.0
      %685 = vmatpush.msra.mxu0 0.0
      %686 = vmatpush.msra.mxu0 0.0
      %687 = vmatpush.msra.mxu0 0.0
      %688 = vmatpush.msra.mxu0 0.0
      %689 = vmatpush.msra.mxu0 0.0
      %690 = vmatpush.msra.mxu0 0.0
      %691 = vmatpush.msra.mxu0 0.0
      %692 = vmatpush.msra.mxu0 0.0
      %693 = vmatpush.msra.mxu0 0.0
      %694 = vmatpush.msra.mxu0 0.0
      %695 = vmatpush.msra.mxu0 %v656
      %696 = vmatmul.f32.gmra.mxu0 %v652
      %v697 = vpop.f32.mrf.mxu0
      %v698 = vadd.f32 0.0, %v697
      %699 = vdwg.mxu0
      %700 = vmatpush.msra.mxu0 0.0
      %701 = vmatpush.msra.mxu0 0.0
      %702 = vmatpush.msra.mxu0 0.0
      %703 = vmatpush.msra.mxu0 0.0
      %704 = vmatpush.msra.mxu0 0.0
      %705 = vmatpush.msra.mxu0 0.0
      %706 = vmatpush.msra.mxu0 0.0
      %707 = vmatpush.msra.mxu0 0.0
      %708 = vmatpush.msra.mxu0 0.0
      %709 = vmatpush.msra.mxu0 0.0
      %710 = vmatpush.msra.mxu0 0.0
      %711 = vmatpush.msra.mxu0 0.0
      %712 = vmatpush.msra.mxu0 0.0
      %713 = vmatpush.msra.mxu0 0.0
      %714 = vmatpush.msra.mxu0 0.0
      %715 = vmatpush.msra.mxu0 %v658
      %716 = vmatmul.f32.gmra.mxu0 %v652
      %v717 = vpop.f32.mrf.mxu0
      %v718 = vadd.f32 0.0, %v717
      %719 = vdwg.mxu0
      %v720 = vadd.f32 %v631, %v678
      %v721 = vadd.f32 %v632, %v698
      %v722 = vadd.f32 %v633, %v718
      %s723 = scalar_lea.vmem %s2, 48
      %v724 = vld [vmem:[%s723] sm:$0xff]
      %725 = vst [vmem:[#allocation1] ss:$2 sm:$0xff] %v199
      %s726 = scalar_lea.vmem [#allocation1], 16
      %727 = vst [vmem:[%s726] ss:$2 sm:$0xff] %v200
      %v728 = vld.sshfl [vmem:[#allocation1] sm:$0xff pattern:$0x75316420]
      %v729 = vld.sshfl [vmem:[#allocation1 + $0x8] sm:$0xff pattern:$0x75316420]
      %v730 = vld.sshfl [vmem:[#allocation1 + $0x10] sm:$0xff pattern:$0x75316420]
      %731 = vrot.lane.b32.xlu0 %v728, 92
      %v732 = vpop.permute.xlu0 %731
      %733 = vrot.lane.b32.xlu0 %v729, 92
      %v734 = vpop.permute.xlu0 %733
      %735 = vrot.lane.b32.xlu0 %v730, 92
      %v736 = vpop.permute.xlu0 %735
      %vm737 = vcmask 752640
      %v738 = vsel %vm737, %v732, %v734
      %v739 = vsel %vm737, %v734, %v736
      %v741 = vsel %vm221, %v724, 0
      %v743 = vsel %vm225, %v738, 0
      %v745 = vsel %vm225, %v739, 0
      %v747 = vsel %vm225, %v736, 0
      %749 = vmatpush.msra.mxu0 0.0
      %750 = vmatpush.msra.mxu0 0.0
      %751 = vmatpush.msra.mxu0 0.0
      %752 = vmatpush.msra.mxu0 0.0
      %753 = vmatpush.msra.mxu0 0.0
      %754 = vmatpush.msra.mxu0 0.0
      %755 = vmatpush.msra.mxu0 0.0
      %756 = vmatpush.msra.mxu0 0.0
      %757 = vmatpush.msra.mxu0 0.0
      %758 = vmatpush.msra.mxu0 0.0
      %759 = vmatpush.msra.mxu0 0.0
      %760 = vmatpush.msra.mxu0 0.0
      %761 = vmatpush.msra.mxu0 0.0
      %762 = vmatpush.msra.mxu0 0.0
      %763 = vmatpush.msra.mxu0 0.0
      %764 = vmatpush.msra.mxu0 %v743
      %765 = vmatmul.f32.gmra.mxu0 %v741
      %v766 = vpop.f32.mrf.mxu0
      %v767 = vadd.f32 0.0, %v766
      %768 = vdwg.mxu0
      %769 = vmatpush.msra.mxu0 0.0
      %770 = vmatpush.msra.mxu0 0.0
      %771 = vmatpush.msra.mxu0 0.0
      %772 = vmatpush.msra.mxu0 0.0
      %773 = vmatpush.msra.mxu0 0.0
      %774 = vmatpush.msra.mxu0 0.0
      %775 = vmatpush.msra.mxu0 0.0
      %776 = vmatpush.msra.mxu0 0.0
      %777 = vmatpush.msra.mxu0 0.0
      %778 = vmatpush.msra.mxu0 0.0
      %779 = vmatpush.msra.mxu0 0.0
      %780 = vmatpush.msra.mxu0 0.0
      %781 = vmatpush.msra.mxu0 0.0
      %782 = vmatpush.msra.mxu0 0.0
      %783 = vmatpush.msra.mxu0 0.0
      %784 = vmatpush.msra.mxu0 %v745
      %785 = vmatmul.f32.gmra.mxu0 %v741
      %v786 = vpop.f32.mrf.mxu0
      %v787 = vadd.f32 0.0, %v786
      %788 = vdwg.mxu0
      %789 = vmatpush.msra.mxu0 0.0
      %790 = vmatpush.msra.mxu0 0.0
      %791 = vmatpush.msra.mxu0 0.0
      %792 = vmatpush.msra.mxu0 0.0
      %793 = vmatpush.msra.mxu0 0.0
      %794 = vmatpush.msra.mxu0 0.0
      %795 = vmatpush.msra.mxu0 0.0
      %796 = vmatpush.msra.mxu0 0.0
      %797 = vmatpush.msra.mxu0 0.0
      %798 = vmatpush.msra.mxu0 0.0
      %799 = vmatpush.msra.mxu0 0.0
      %800 = vmatpush.msra.mxu0 0.0
      %801 = vmatpush.msra.mxu0 0.0
      %802 = vmatpush.msra.mxu0 0.0
      %803 = vmatpush.msra.mxu0 0.0
      %804 = vmatpush.msra.mxu0 %v747
      %805 = vmatmul.f32.gmra.mxu0 %v741
      %v806 = vpop.f32.mrf.mxu0
      %v807 = vadd.f32 0.0, %v806
      %808 = vdwg.mxu0
      %v809 = vadd.f32 %v720, %v767
      %v810 = vadd.f32 %v721, %v787
      %v811 = vadd.f32 %v722, %v807
      %s812 = scalar_lea.vmem %s2, 56
      %v813 = vld [vmem:[%s812] sm:$0xff]
      %814 = vst [vmem:[#allocation1] ss:$2 sm:$0xff] %v199
      %s815 = scalar_lea.vmem [#allocation1], 16
      %816 = vst [vmem:[%s815] ss:$2 sm:$0xff] %v200
      %v817 = vld.sshfl [vmem:[#allocation1] sm:$0xff pattern:$0x75316420]
      %v818 = vld.sshfl [vmem:[#allocation1 + $0x8] sm:$0xff pattern:$0x75316420]
      %v819 = vld.sshfl [vmem:[#allocation1 + $0x10] sm:$0xff pattern:$0x75316420]
      %820 = vrot.lane.b32.xlu0 %v817, 91
      %v821 = vpop.permute.xlu0 %820
      %822 = vrot.lane.b32.xlu0 %v818, 91
      %v823 = vpop.permute.xlu0 %822
      %824 = vrot.lane.b32.xlu0 %v819, 91
      %v825 = vpop.permute.xlu0 %824
      %vm826 = vcmask 744448
      %v827 = vsel %vm826, %v821, %v823
      %v828 = vsel %vm826, %v823, %v825
      %v830 = vsel %vm221, %v813, 0
      %v832 = vsel %vm225, %v827, 0
      %v834 = vsel %vm225, %v828, 0
      %v836 = vsel %vm225, %v825, 0
      %838 = vmatpush.msra.mxu0 0.0
      %839 = vmatpush.msra.mxu0 0.0
      %840 = vmatpush.msra.mxu0 0.0
      %841 = vmatpush.msra.mxu0 0.0
      %842 = vmatpush.msra.mxu0 0.0
      %843 = vmatpush.msra.mxu0 0.0
      %844 = vmatpush.msra.mxu0 0.0
      %845 = vmatpush.msra.mxu0 0.0
      %846 = vmatpush.msra.mxu0 0.0
      %847 = vmatpush.msra.mxu0 0.0
      %848 = vmatpush.msra.mxu0 0.0
      %849 = vmatpush.msra.mxu0 0.0
      %850 = vmatpush.msra.mxu0 0.0
      %851 = vmatpush.msra.mxu0 0.0
      %852 = vmatpush.msra.mxu0 0.0
      %853 = vmatpush.msra.mxu0 %v832
      %854 = vmatmul.f32.gmra.mxu0 %v830
      %v855 = vpop.f32.mrf.mxu0
      %v856 = vadd.f32 0.0, %v855
      %857 = vdwg.mxu0
      %858 = vmatpush.msra.mxu0 0.0
      %859 = vmatpush.msra.mxu0 0.0
      %860 = vmatpush.msra.mxu0 0.0
      %861 = vmatpush.msra.mxu0 0.0
      %862 = vmatpush.msra.mxu0 0.0
      %863 = vmatpush.msra.mxu0 0.0
      %864 = vmatpush.msra.mxu0 0.0
      %865 = vmatpush.msra.mxu0 0.0
      %866 = vmatpush.msra.mxu0 0.0
      %867 = vmatpush.msra.mxu0 0.0
      %868 = vmatpush.msra.mxu0 0.0
      %869 = vmatpush.msra.mxu0 0.0
      %870 = vmatpush.msra.mxu0 0.0
      %871 = vmatpush.msra.mxu0 0.0
      %872 = vmatpush.msra.mxu0 0.0
      %873 = vmatpush.msra.mxu0 %v834
      %874 = vmatmul.f32.gmra.mxu0 %v830
      %v875 = vpop.f32.mrf.mxu0
      %v876 = vadd.f32 0.0, %v875
      %877 = vdwg.mxu0
      %878 = vmatpush.msra.mxu0 0.0
      %879 = vmatpush.msra.mxu0 0.0
      %880 = vmatpush.msra.mxu0 0.0
      %881 = vmatpush.msra.mxu0 0.0
      %882 = vmatpush.msra.mxu0 0.0
      %883 = vmatpush.msra.mxu0 0.0
      %884 = vmatpush.msra.mxu0 0.0
      %885 = vmatpush.msra.mxu0 0.0
      %886 = vmatpush.msra.mxu0 0.0
      %887 = vmatpush.msra.mxu0 0.0
      %888 = vmatpush.msra.mxu0 0.0
      %889 = vmatpush.msra.mxu0 0.0
      %890 = vmatpush.msra.mxu0 0.0
      %891 = vmatpush.msra.mxu0 0.0
      %892 = vmatpush.msra.mxu0 0.0
      %893 = vmatpush.msra.mxu0 %v836
      %894 = vmatmul.f32.gmra.mxu0 %v830
      %v895 = vpop.f32.mrf.mxu0
      %v896 = vadd.f32 0.0, %v895
      %897 = vdwg.mxu0
      %v898 = vadd.f32 %v809, %v856
      %v899 = vadd.f32 %v810, %v876
      %v900 = vadd.f32 %v811, %v896
      %s901 = scalar_lea.vmem %s2, 64
      %v902 = vld [vmem:[%s901] sm:$0xff]
      %903 = vst [vmem:[#allocation1] ss:$2 sm:$0xff] %v199
      %s904 = scalar_lea.vmem [#allocation1], 16
      %905 = vst [vmem:[%s904] ss:$2 sm:$0xff] %v200
      %v906 = vld.sshfl [vmem:[#allocation1] sm:$0xff pattern:$0x75316420]
      %v907 = vld.sshfl [vmem:[#allocation1 + $0x8] sm:$0xff pattern:$0x75316420]
      %v908 = vld.sshfl [vmem:[#allocation1 + $0x10] sm:$0xff pattern:$0x75316420]
      %909 = vrot.lane.b32.xlu0 %v906, 90
      %v910 = vpop.permute.xlu0 %909
      %911 = vrot.lane.b32.xlu0 %v907, 90
      %v912 = vpop.permute.xlu0 %911
      %913 = vrot.lane.b32.xlu0 %v908, 90
      %v914 = vpop.permute.xlu0 %913
      %vm915 = vcmask 736256
      %v916 = vsel %vm915, %v910, %v912
      %v917 = vsel %vm915, %v912, %v914
      %v919 = vsel %vm221, %v902, 0
      %v921 = vsel %vm225, %v916, 0
      %v923 = vsel %vm225, %v917, 0
      %v925 = vsel %vm225, %v914, 0
      %927 = vmatpush.msra.mxu0 0.0
      %928 = vmatpush.msra.mxu0 0.0
      %929 = vmatpush.msra.mxu0 0.0
      %930 = vmatpush.msra.mxu0 0.0
      %931 = vmatpush.msra.mxu0 0.0
      %932 = vmatpush.msra.mxu0 0.0
      %933 = vmatpush.msra.mxu0 0.0
      %934 = vmatpush.msra.mxu0 0.0
      %935 = vmatpush.msra.mxu0 0.0
      %936 = vmatpush.msra.mxu0 0.0
      %937 = vmatpush.msra.mxu0 0.0
      %938 = vmatpush.msra.mxu0 0.0
      %939 = vmatpush.msra.mxu0 0.0
      %940 = vmatpush.msra.mxu0 0.0
      %941 = vmatpush.msra.mxu0 0.0
      %942 = vmatpush.msra.mxu0 %v921
      %943 = vmatmul.f32.gmra.mxu0 %v919
      %v944 = vpop.f32.mrf.mxu0
      %v945 = vadd.f32 0.0, %v944
      %946 = vdwg.mxu0
      %947 = vmatpush.msra.mxu0 0.0
      %948 = vmatpush.msra.mxu0 0.0
      %949 = vmatpush.msra.mxu0 0.0
      %950 = vmatpush.msra.mxu0 0.0
      %951 = vmatpush.msra.mxu0 0.0
      %952 = vmatpush.msra.mxu0 0.0
      %953 = vmatpush.msra.mxu0 0.0
      %954 = vmatpush.msra.mxu0 0.0
      %955 = vmatpush.msra.mxu0 0.0
      %956 = vmatpush.msra.mxu0 0.0
      %957 = vmatpush.msra.mxu0 0.0
      %958 = vmatpush.msra.mxu0 0.0
      %959 = vmatpush.msra.mxu0 0.0
      %960 = vmatpush.msra.mxu0 0.0
      %961 = vmatpush.msra.mxu0 0.0
      %962 = vmatpush.msra.mxu0 %v923
      %963 = vmatmul.f32.gmra.mxu0 %v919
      %v964 = vpop.f32.mrf.mxu0
      %v965 = vadd.f32 0.0, %v964
      %966 = vdwg.mxu0
      %967 = vmatpush.msra.mxu0 0.0
      %968 = vmatpush.msra.mxu0 0.0
      %969 = vmatpush.msra.mxu0 0.0
      %970 = vmatpush.msra.mxu0 0.0
      %971 = vmatpush.msra.mxu0 0.0
      %972 = vmatpush.msra.mxu0 0.0
      %973 = vmatpush.msra.mxu0 0.0
      %974 = vmatpush.msra.mxu0 0.0
      %975 = vmatpush.msra.mxu0 0.0
      %976 = vmatpush.msra.mxu0 0.0
      %977 = vmatpush.msra.mxu0 0.0
      %978 = vmatpush.msra.mxu0 0.0
      %979 = vmatpush.msra.mxu0 0.0
      %980 = vmatpush.msra.mxu0 0.0
      %981 = vmatpush.msra.mxu0 0.0
      %982 = vmatpush.msra.mxu0 %v925
      %983 = vmatmul.f32.gmra.mxu0 %v919
      %v984 = vpop.f32.mrf.mxu0
      %v985 = vadd.f32 0.0, %v984
      %986 = vdwg.mxu0
      %v987 = vadd.f32 %v898, %v945
      %v988 = vadd.f32 %v899, %v965
      %v989 = vadd.f32 %v900, %v985
      %s990 = sld [smem:[#allocation2]]
      %v991 = vstv %s990
      %v992 = vmul.f32 %v987, %v991
      %v993 = vmul.f32 %v988, %v991
      %v994 = vmul.f32 %v989, %v991
      %v995 = vld [vmem:[%s3] sm:$0xff]
      %997 = vset.pattern.permute.xlu0 0
      %998 = vperm.xlu0 %997, %v995
      %v999 = vpop.permute.xlu0 %998
      %v1001 = vadd.f32 %v992, %v999
      %v1002 = vadd.f32 %v993, %v999
      %v1003 = vadd.f32 %v994, %v999
      %1004 = vst [vmem:[%s198] sm:$0xff] %v1001
      %1005 = vst [vmem:[%s198 + $0x8] sm:$0xff] %v1002
      %vm1006 = vcmask 556032
      %1007 = vst.msk [vmem:[%s198 + $0x10] sm:$0xff] %vm1006, %v1003
      %p1008 = scmp.lt.s32.totalorder %s16, 1
      %s1009 = scalar_select %p1008, %s16, 1
      %s1010 = smul.addr %s1009, 3
      %s1011 = smul.addr %s1010, 8
      %s1012 = scalar_lea.vmem %s4, %s1011
      // Predicated region
      $region37: #{spectral_norm_conv_forward.3} parent=35 // pred_check
        %p1013 = pneg %p123
      $region38: #{spectral_norm_conv_forward.3} parent=35 // pred_check_branch
        %1015 = sbr.rel (%p1013) target = $region40
      $region39: #{spectral_norm_conv_forward.3} parent=35 // pred_region
        _
      $region40: #{spectral_norm_conv_forward.3} parent=35 // pred_fallthru
        _
    $region36: #{spectral_norm_conv_forward.3} parent=5 // pred_fallthru
      _
    %p1016 = scmp.le.s32.totalorder 2, %s11
    // Predicated region
    $region41: #{spectral_norm_conv_forward.3} parent=5 // pred_check
      %p1017 = pneg %p1016
    $region42: #{spectral_norm_conv_forward.3} parent=5 // pred_check_branch
      %1019 = sbr.rel (%p1017) target = $region44
    $region43: #{spectral_norm_conv_forward.3} parent=5 // pred_region
      %s1020 = ssub.s32 %s11, 2
      // Predicated region
      $region45: #{spectral_norm_conv_forward.3} parent=43 // pred_check
        %p1021 = pneg %p129
      $region46: #{spectral_norm_conv_forward.3} parent=43 // pred_check_branch
        %1023 = sbr.rel (%p1021) target = $region48
      $region47: #{spectral_norm_conv_forward.3} parent=43 // pred_region
        %p1024 = scmp.lt.s32.totalorder %s17, 1
        %s1025 = scalar_select %p1024, %s17, 1
        %s1026 = smul.addr %s1025, 3
        %s1027 = smul.addr %s1026, 8
        %s1028 = scalar_lea.vmem %s4, %s1027
      $region48: #{spectral_norm_conv_forward.3} parent=43 // pred_fallthru
        _
    $region44: #{spectral_norm_conv_forward.3} parent=5 // pred_fallthru
      _
  $region6: #{spectral_norm_conv_forward.3} parent=0 // loop_footer
    %s15 = sadd.s32 1, %s11
  $region7: #{spectral_norm_conv_forward.3} parent=0 // loop_footer_branch
    %10 = sbr.rel target = $region3
  $region8: #{spectral_norm_conv_forward.3} parent=0 // loop_exit
    _

</llo_original>
